<compile_context>
chip_gen: v7x
topology: tpu7x:2x2x1
jax: 0.10.0
libtpu: 0.0.40
codegen_flags: <defaults>
</compile_context>

<pallas_src>
import functools

import jax
import jax.numpy as jnp
from jax.experimental import pallas as pl
from jax.experimental.pallas import tpu as pltpu


def _round_up(a: int, b: int) -> int:
    return pl.cdiv(a, b) * b


def mlp_kernel(x_ref, w1_ref, b1_ref, w2_ref, b2_ref, o_ref):
    # x_ref : [TM, IN]     (f32; cast to bf16 in-kernel for the MXU)
    # w1_ref: [IN, H_P]    (bf16)      b1_ref: [1, H_P]   (f32)
    # w2_ref: [H_P, OUT_P] (bf16)      b2_ref: [1, OUT_P] (f32)
    # o_ref : [TM, OUT_P]  (f32)
    x = x_ref[...].astype(w1_ref.dtype)
    # First linear (MXU, f32 accumulate) + bias + ReLU in f32 on the VPU.
    h = jnp.dot(x, w1_ref[...], preferred_element_type=jnp.float32)
    h = jnp.maximum(h + b1_ref[...], 0.0)
    # Second linear (cast activations back to the streaming dtype for the MXU).
    out = jnp.dot(h.astype(w2_ref.dtype), w2_ref[...],
                  preferred_element_type=jnp.float32)
    o_ref[...] = (out + b2_ref[...]).astype(o_ref.dtype)


@functools.partial(jax.jit, static_argnames=("block_m", "compute_dtype"))
def neural_network_forward(x, w1, b1, w2, b2, *, block_m=1024,
                           compute_dtype=jnp.bfloat16):
    """x: [B, input_size] f32. Returns [B, output_size] f32."""
    B, in_dim = x.shape
    hidden = w1.shape[1]
    out_dim = w2.shape[1]

    # Hidden stays lane-dense (15 -> 128); output uses the minimum legal f32
    # width (6 -> 8) to minimize the dominant HBM writeback stream.
    h_p = _round_up(hidden, 128)
    out_p = _round_up(out_dim, 8)

    # Batch tile: large multiple of 8, capped for small batches; pad B so the
    # grid divides evenly (padded rows are sliced off below).
    tm = _round_up(min(block_m, _round_up(B, 8)), 8)
    b_pad = _round_up(B, tm)
    grid = (b_pad // tm,)

    # x streams in as f32 with its natural feature width; only the (cheap)
    # batch pad is applied, and skipped entirely when not needed.
    x_p = x if b_pad == B else jnp.pad(x, ((0, b_pad - B), (0, 0)))

    # Tiny one-time weight/bias prep (cast + zero pad). Numerically a no-op.
    w1_p = jnp.pad(w1.astype(compute_dtype), ((0, 0), (0, h_p - hidden)))
    b1_p = jnp.pad(b1.astype(jnp.float32).reshape(1, -1),
                   ((0, 0), (0, h_p - hidden)))
    w2_p = jnp.pad(w2.astype(compute_dtype),
                   ((0, h_p - hidden), (0, out_p - out_dim)))
    b2_p = jnp.pad(b2.astype(jnp.float32).reshape(1, -1),
                   ((0, 0), (0, out_p - out_dim)))

    out_padded = pl.pallas_call(
        mlp_kernel,
        out_shape=jax.ShapeDtypeStruct((b_pad, out_p), jnp.float32),
        grid_spec=pltpu.PrefetchScalarGridSpec(
            num_scalar_prefetch=0,
            grid=grid,
            in_specs=[
                # x: tiled along batch -> double-buffered by Pallas. Last dim
                # equals the full array dim (12), so the BlockSpec is legal.
                pl.BlockSpec((tm, in_dim), lambda i: (i, 0)),
                # Weights/biases: constant block index -> VMEM-resident.
                pl.BlockSpec((in_dim, h_p), lambda i: (0, 0)),
                pl.BlockSpec((1, h_p), lambda i: (0, 0)),
                pl.BlockSpec((h_p, out_p), lambda i: (0, 0)),
                pl.BlockSpec((1, out_p), lambda i: (0, 0)),
            ],
            out_specs=pl.BlockSpec((tm, out_p), lambda i: (i, 0)),
        ),
        compiler_params=pltpu.CompilerParams(
            # Batch axis is embarrassingly parallel: lets Mosaic shard grid
            # steps across both TensorCores on v7x.
            dimension_semantics=("parallel",),
        ),
    )(x_p, w1_p, b1_p, w2_p, b2_p)

    # Strip batch and (small) output padding outside the kernel.
    return out_padded[:B, :out_dim]


def init_params(key, input_size=12, hidden_size=15, output_size=6):
    """Deterministic init mirroring nn.Linear shapes (stored as [in, out])."""
    k1, k2, k3, k4 = jax.random.split(key, 4)
    # PyTorch nn.Linear default init: U(-1/sqrt(fan_in), 1/sqrt(fan_in)).
    bound1 = 1.0 / jnp.sqrt(input_size)
    bound2 = 1.0 / jnp.sqrt(hidden_size)
    w1 = jax.random.uniform(k1, (input_size, hidden_size), jnp.float32,
                            -bound1, bound1)
    b1 = jax.random.uniform(k2, (1, hidden_size), jnp.float32, -bound1, bound1)
    w2 = jax.random.uniform(k3, (hidden_size, output_size), jnp.float32,
                            -bound2, bound2)
    b2 = jax.random.uniform(k4, (1, output_size), jnp.float32, -bound2, bound2)
    return w1, b1, w2, b2


if __name__ == "__main__":
    key = jax.random.PRNGKey(0)
    k_x, k_p = jax.random.split(key)

    # Small but non-trivial batch; deliberately NOT a multiple of 8 so the
    # padded-tail path is exercised.
    batch = 200
    input_size, hidden_size, output_size = 12, 15, 6

    x = jax.random.normal(k_x, (batch, input_size), jnp.float32)
    w1, b1, w2, b2 = init_params(k_p, input_size, hidden_size, output_size)

    out = neural_network_forward(x, w1, b1, w2, b2)
    out = jax.block_until_ready(out)
    assert out.shape == (batch, output_size)

    # Reference #1: same bf16-streaming math in plain JAX (tight tolerance).
    xc, w1c, w2c = (x.astype(jnp.bfloat16), w1.astype(jnp.bfloat16),
                    w2.astype(jnp.bfloat16))
    h = jnp.maximum(jnp.dot(xc, w1c, preferred_element_type=jnp.float32) + b1,
                    0.0)
    ref_bf16 = jnp.dot(h.astype(jnp.bfloat16), w2c,
                       preferred_element_type=jnp.float32) + b2
    assert jnp.allclose(out, ref_bf16, atol=1e-3, rtol=1e-3)

    # Reference #2: exact f32 math of the PyTorch module (loose tolerance,
    # accounts for bf16 streaming of x / weights on the MXU).
    ref_f32 = jnp.maximum(x @ w1 + b1, 0.0) @ w2 + b2
    assert jnp.allclose(out, ref_f32, atol=5e-2, rtol=5e-2)

    print("KERNEL_OK")
</pallas_src>

<mosaic_0001>
module attributes {stable_mosaic.version = 11 : i64} {
  func.func @mlp_kernel(%arg0: i32, %arg1: memref<200x12xf32, #tpu.memory_space<vmem>>, %arg2: memref<12x128xbf16, #tpu.memory_space<vmem>>, %arg3: memref<1x128xf32, #tpu.memory_space<vmem>>, %arg4: memref<128x8xbf16, #tpu.memory_space<vmem>>, %arg5: memref<1x8xf32, #tpu.memory_space<vmem>>, %arg6: memref<200x8xf32, #tpu.memory_space<vmem>>) attributes {dimension_semantics = [#tpu.dimension_semantics<parallel>], iteration_bounds = array<i64: 1>, scalar_prefetch = 0 : i64, scratch_operands = 0 : i64, tpu.core_type = #tpu.core_type<tc>, window_params = [{transform_indices = @transform_0, window_bounds = array<i64: 200, 12>}, {pipeline_mode = #tpu.pipeline_mode<synchronous>, transform_indices = @transform_1, window_bounds = array<i64: 12, 128>}, {pipeline_mode = #tpu.pipeline_mode<synchronous>, transform_indices = @transform_2, window_bounds = array<i64: 1, 128>}, {pipeline_mode = #tpu.pipeline_mode<synchronous>, transform_indices = @transform_3, window_bounds = array<i64: 128, 8>}, {pipeline_mode = #tpu.pipeline_mode<synchronous>, transform_indices = @transform_4, window_bounds = array<i64: 1, 8>}, {transform_indices = @transform_5, window_bounds = array<i64: 200, 8>}]} {
    %c0 = arith.constant 0 : index
    %c0_0 = arith.constant 0 : index
    %0 = vector.load %arg1[%c0, %c0_0] : memref<200x12xf32, #tpu.memory_space<vmem>>, vector<200x12xf32>
    %1 = arith.truncf %0 : vector<200x12xf32> to vector<200x12xbf16>
    %c0_1 = arith.constant 0 : index
    %c0_2 = arith.constant 0 : index
    %2 = vector.load %arg2[%c0_1, %c0_2] : memref<12x128xbf16, #tpu.memory_space<vmem>>, vector<12x128xbf16>
    %cst = arith.constant dense<0.000000e+00> : vector<200x128xf32>
    %3 = tpu.matmul %1, %2, %cst {dimension_numbers = #tpu.dot_dimension_numbers<[1], [0], [0], [1], [0, 0, 1, 1], [], []>} : vector<200x12xbf16>, vector<12x128xbf16>, vector<200x128xf32> -> vector<200x128xf32>
    %c0_3 = arith.constant 0 : index
    %c0_4 = arith.constant 0 : index
    %4 = vector.load %arg3[%c0_3, %c0_4] : memref<1x128xf32, #tpu.memory_space<vmem>>, vector<1x128xf32>
    %5 = vector.broadcast %4 : vector<1x128xf32> to vector<200x128xf32>
    %6 = arith.addf %3, %5 : vector<200x128xf32>
    %cst_5 = arith.constant 0.000000e+00 : f32
    %7 = vector.broadcast %cst_5 : f32 to vector<200x128xf32>
    %8 = arith.maximumf %6, %7 : vector<200x128xf32>
    %9 = arith.truncf %8 : vector<200x128xf32> to vector<200x128xbf16>
    %c0_6 = arith.constant 0 : index
    %c0_7 = arith.constant 0 : index
    %10 = vector.load %arg4[%c0_6, %c0_7] : memref<128x8xbf16, #tpu.memory_space<vmem>>, vector<128x8xbf16>
    %cst_8 = arith.constant dense<0.000000e+00> : vector<200x8xf32>
    %11 = tpu.matmul %9, %10, %cst_8 {dimension_numbers = #tpu.dot_dimension_numbers<[1], [0], [0], [1], [0, 0, 1, 1], [], []>} : vector<200x128xbf16>, vector<128x8xbf16>, vector<200x8xf32> -> vector<200x8xf32>
    %c0_9 = arith.constant 0 : index
    %c0_10 = arith.constant 0 : index
    %12 = vector.load %arg5[%c0_9, %c0_10] : memref<1x8xf32, #tpu.memory_space<vmem>>, vector<1x8xf32>
    %13 = vector.broadcast %12 : vector<1x8xf32> to vector<200x8xf32>
    %14 = arith.addf %11, %13 : vector<200x8xf32>
    %c0_11 = arith.constant 0 : index
    %c0_12 = arith.constant 0 : index
    %15 = vector.load %arg6[%c0_11, %c0_12] : memref<200x8xf32, #tpu.memory_space<vmem>>, vector<200x8xf32>
    tpu.vector_store %arg6[%c0_11, %c0_12], %14 {strides = array<i32>} : memref<200x8xf32, #tpu.memory_space<vmem>>, vector<200x8xf32>,
    return
  }
  func.func @transform_0(%arg0: i32) -> (i32, i32) {
    %c0_i32 = arith.constant 0 : i32
    %c0_i32_0 = arith.constant 0 : i32
    return %arg0, %c0_i32 : i32, i32
  }
  func.func @transform_1(%arg0: i32) -> (i32, i32) {
    %c0_i32 = arith.constant 0 : i32
    %c0_i32_0 = arith.constant 0 : i32
    %c0_i32_1 = arith.constant 0 : i32
    return %c0_i32, %c0_i32_0 : i32, i32
  }
  func.func @transform_2(%arg0: i32) -> (i32, i32) {
    %c0_i32 = arith.constant 0 : i32
    %c0_i32_0 = arith.constant 0 : i32
    %c0_i32_1 = arith.constant 0 : i32
    return %c0_i32, %c0_i32_0 : i32, i32
  }
  func.func @transform_3(%arg0: i32) -> (i32, i32) {
    %c0_i32 = arith.constant 0 : i32
    %c0_i32_0 = arith.constant 0 : i32
    %c0_i32_1 = arith.constant 0 : i32
    return %c0_i32, %c0_i32_0 : i32, i32
  }
  func.func @transform_4(%arg0: i32) -> (i32, i32) {
    %c0_i32 = arith.constant 0 : i32
    %c0_i32_0 = arith.constant 0 : i32
    %c0_i32_1 = arith.constant 0 : i32
    return %c0_i32, %c0_i32_0 : i32, i32
  }
  func.func @transform_5(%arg0: i32) -> (i32, i32) {
    %c0_i32 = arith.constant 0 : i32
    %c0_i32_0 = arith.constant 0 : i32
    return %arg0, %c0_i32 : i32, i32
  }
}

</mosaic_0001>

<llo_original>
// kernel: neural_network_forward.1
$region0: #{neural_network_forward.1}
  #allocation0 [shape = 'u32[]', space=smem, size = 0x4, offset = 0x4, fixed_abs, tag = 'smem constant byte address 0x4 - core index']
  #allocation1 [shape = 'u32[144,128]{1,0:T(1,128)}', space=vmem, size = 0x12000, scoped, tag = 'internal scratch']
  %s0 = inlined_call_operand.vmem [shape: f32[200,12], index: 0, kind: input, shape index: {}]
  %s1 = inlined_call_operand.vmem [shape: bf16[12,128], index: 1, kind: input, shape index: {}]
  %s2 = inlined_call_operand.vmem [shape: f32[1,128], index: 2, kind: input, shape index: {}]
  %s3 = inlined_call_operand.vmem [shape: bf16[128,8], index: 3, kind: input, shape index: {}]
  %s4 = inlined_call_operand.vmem [shape: f32[1,8], index: 4, kind: input, shape index: {}]
  %s5 = inlined_call_operand.vmem [shape: f32[200,8], index: 5, kind: output, shape index: {}]
  %s6 = sld [smem:[#allocation0]]
  $region30: #{neural_network_forward.1} parent=0
    _
  %s8 = ssub.s32 1, %s6
  %s9 = scalar_select 0, %s8, %s6
  // Predicated region
  $region2: #{neural_network_forward.1} parent=0 // pred_check
    _
  $region3: #{neural_network_forward.1} parent=0 // pred_check_branch
    %11 = sbr.rel (0) target = $region5
  $region4: #{neural_network_forward.1} parent=0 // pred_region
    _
  $region5: #{neural_network_forward.1} parent=0 // pred_fallthru
    _
  // Predicated region
  $region6: #{neural_network_forward.1} parent=0 // pred_check
    _
  $region7: #{neural_network_forward.1} parent=0 // pred_check_branch
    %13 = sbr.rel (0) target = $region9
  $region8: #{neural_network_forward.1} parent=0 // pred_region
    _
  $region9: #{neural_network_forward.1} parent=0 // pred_fallthru
    _
  // Predicated region
  $region10: #{neural_network_forward.1} parent=0 // pred_check
    _
  $region11: #{neural_network_forward.1} parent=0 // pred_check_branch
    %15 = sbr.rel (0) target = $region13
  $region12: #{neural_network_forward.1} parent=0 // pred_region
    _
  $region13: #{neural_network_forward.1} parent=0 // pred_fallthru
    _
  // Predicated region
  $region14: #{neural_network_forward.1} parent=0 // pred_check
    _
  $region15: #{neural_network_forward.1} parent=0 // pred_check_branch
    %17 = sbr.rel (0) target = $region17
  $region16: #{neural_network_forward.1} parent=0 // pred_region
    _
  $region17: #{neural_network_forward.1} parent=0 // pred_fallthru
    _
  // Predicated region
  $region18: #{neural_network_forward.1} parent=0 // pred_check
    _
  $region19: #{neural_network_forward.1} parent=0 // pred_check_branch
    %19 = sbr.rel (0) target = $region21
  $region20: #{neural_network_forward.1} parent=0 // pred_region
    _
  $region21: #{neural_network_forward.1} parent=0 // pred_fallthru
    _
  %v21 = vld [vmem:[%s0] sm:$0xff]
  %v22 = vld [vmem:[%s0 + $0x8] sm:$0xff]
  %v23 = vld [vmem:[%s0 + $0x10] sm:$0xff]
  %v24 = vld [vmem:[%s0 + $0x18] sm:$0xff]
  %v25 = vld [vmem:[%s0 + $0x20] sm:$0xff]
  %v26 = vld [vmem:[%s0 + $0x28] sm:$0xff]
  %v27 = vld [vmem:[%s0 + $0x30] sm:$0xff]
  %v28 = vld [vmem:[%s0 + $0x38] sm:$0xff]
  %v29 = vld [vmem:[%s0 + $0x40] sm:$0xff]
  %v30 = vld [vmem:[%s0 + $0x48] sm:$0xff]
  %v31 = vld [vmem:[%s0 + $0x50] sm:$0xff]
  %v32 = vld [vmem:[%s0 + $0x58] sm:$0xff]
  %v33 = vld [vmem:[%s0 + $0x60] sm:$0xff]
  %v34 = vld [vmem:[%s0 + $0x68] sm:$0xff]
  %v35 = vld [vmem:[%s0 + $0x70] sm:$0xff]
  %v36 = vld [vmem:[%s0 + $0x78] sm:$0xff]
  %v37 = vld [vmem:[%s0 + $0x80] sm:$0xff]
  %v38 = vld [vmem:[%s0 + $0x88] sm:$0xff]
  %v39 = vld [vmem:[%s0 + $0x90] sm:$0xff]
  %v40 = vld [vmem:[%s0 + $0x98] sm:$0xff]
  %v41 = vld [vmem:[%s0 + $0xa0] sm:$0xff]
  %v42 = vld [vmem:[%s0 + $0xa8] sm:$0xff]
  %v43 = vld [vmem:[%s0 + $0xb0] sm:$0xff]
  %v44 = vld [vmem:[%s0 + $0xb8] sm:$0xff]
  %v45 = vld [vmem:[%s0 + $0xc0] sm:$0xff]
  %v46 = vpack.c.bf16 %v22, %v21
  %v47 = vpack.c.bf16 %v24, %v23
  %v48 = vpack.c.bf16 %v26, %v25
  %v49 = vpack.c.bf16 %v28, %v27
  %v50 = vpack.c.bf16 %v30, %v29
  %v51 = vpack.c.bf16 %v32, %v31
  %v52 = vpack.c.bf16 %v34, %v33
  %v53 = vpack.c.bf16 %v36, %v35
  %v54 = vpack.c.bf16 %v38, %v37
  %v55 = vpack.c.bf16 %v40, %v39
  %v56 = vpack.c.bf16 %v42, %v41
  %v57 = vpack.c.bf16 %v44, %v43
  %v58 = vpack.c.bf16 %v45, %v45
  %v59 = vld [vmem:[%s1] sm:$0xf]
  %v60 = vld [vmem:[%s1 + $0x4] sm:$0x3]
  %v61 = vld [vmem:[%s2] sm:$0x1]
  %v63 = vlaneseq
  %v64 = vshrl.u32 %v63, 7
  %v65 = vsub.s32 0, %v64
  %v66 = vrot.slane %v61, %v65
  %v70 = vunpack.c.l.b16 %v59
  %v71 = vunpack.c.l.b16 %v60
  %v72 = vpack.c.b16 %v71, %v70
  %vm73 = vcmask 97280
  %v75 = vsel %vm73, %v46, 0
  %v78 = vsel %vm73, %v47, 0
  %v81 = vsel %vm73, %v48, 0
  %v84 = vsel %vm73, %v49, 0
  %v87 = vsel %vm73, %v50, 0
  %v90 = vsel %vm73, %v51, 0
  %v93 = vsel %vm73, %v52, 0
  %v96 = vsel %vm73, %v53, 0
  %v99 = vsel %vm73, %v54, 0
  %v102 = vsel %vm73, %v55, 0
  %v105 = vsel %vm73, %v56, 0
  %v108 = vsel %vm73, %v57, 0
  %v111 = vsel %vm73, %v58, 0
  %vm113 = vcmask 1045504
  %v115 = vsel %vm113, %v72, 0
  %117 = vmatprep.subr.bf16.mxu0 0
  %118 = vmatpush1.bf16.msra.mxu0 %v115
  %119 = vmatprep.subr.bf16.mxu0 0
  %120 = vmatpush1.bf16.msra.mxu0 0
  %121 = vmatprep.subr.bf16.mxu0 0
  %122 = vmatpush1.bf16.msra.mxu0 0
  %123 = vmatprep.subr.bf16.mxu0 0
  %124 = vmatpush1.bf16.msra.mxu0 0
  %125 = vmatprep.subr.bf16.mxu0 0
  %126 = vmatpush1.bf16.msra.mxu0 0
  %127 = vmatprep.subr.bf16.mxu0 0
  %128 = vmatpush1.bf16.msra.mxu0 0
  %129 = vmatprep.subr.bf16.mxu0 0
  %130 = vmatpush1.bf16.msra.mxu0 0
  %131 = vmatprep.subr.bf16.mxu0 0
  %132 = vmatpush1.bf16.msra.mxu0 0
  %133 = vmatprep.subr.bf16.mxu0 0
  %134 = vmatpush1.bf16.msra.mxu0 0
  %135 = vmatprep.subr.bf16.mxu0 0
  %136 = vmatpush1.bf16.msra.mxu0 0
  %137 = vmatprep.subr.bf16.mxu0 0
  %138 = vmatpush1.bf16.msra.mxu0 0
  %139 = vmatprep.subr.bf16.mxu0 0
  %140 = vmatpush1.bf16.msra.mxu0 0
  %141 = vmatprep.subr.bf16.mxu0 0
  %142 = vmatpush1.bf16.msra.mxu0 0
  %143 = vmatprep.subr.bf16.mxu0 0
  %144 = vmatpush1.bf16.msra.mxu0 0
  %145 = vmatprep.subr.bf16.mxu0 0
  %146 = vmatpush1.bf16.msra.mxu0 0
  %147 = vmatprep.subr.bf16.mxu0 0
  %148 = vmatpush1.bf16.msra.mxu0 0
  %149 = vmatprep.mubr.bf16.mxu0 0
  %150 = vmatmul.mubr.bf16.gmra.mrb[0].mxu0 %v75
  %v151 = vpop.f32.mrb[0].mxu0
  %v152 = vadd.f32 %v66, %v151
  %v153 = vpop.f32.mrb[0].mxu0
  %v154 = vpop.f32.mrb[0].mxu0
  %v155 = vadd.f32 %v66, %v154
  %v156 = vpop.f32.mrb[0].mxu0
  %157 = vmatprep.mubr.bf16.mxu0 0
  %158 = vmatmul.mubr.bf16.gmra.mrb[0].mxu0 %v78
  %v159 = vpop.f32.mrb[0].mxu0
  %v160 = vadd.f32 %v66, %v159
  %v161 = vpop.f32.mrb[0].mxu0
  %v162 = vpop.f32.mrb[0].mxu0
  %v163 = vadd.f32 %v66, %v162
  %v164 = vpop.f32.mrb[0].mxu0
  %165 = vmatprep.mubr.bf16.mxu0 0
  %166 = vmatmul.mubr.bf16.gmra.mrb[0].mxu0 %v81
  %v167 = vpop.f32.mrb[0].mxu0
  %v168 = vadd.f32 %v66, %v167
  %v169 = vpop.f32.mrb[0].mxu0
  %v170 = vpop.f32.mrb[0].mxu0
  %v171 = vadd.f32 %v66, %v170
  %v172 = vpop.f32.mrb[0].mxu0
  %173 = vmatprep.mubr.bf16.mxu0 0
  %174 = vmatmul.mubr.bf16.gmra.mrb[0].mxu0 %v84
  %v175 = vpop.f32.mrb[0].mxu0
  %v176 = vadd.f32 %v66, %v175
  %v177 = vpop.f32.mrb[0].mxu0
  %v178 = vpop.f32.mrb[0].mxu0
  %v179 = vadd.f32 %v66, %v178
  %v180 = vpop.f32.mrb[0].mxu0
  %181 = vmatprep.mubr.bf16.mxu0 0
  %182 = vmatmul.mubr.bf16.gmra.mrb[0].mxu0 %v87
  %v183 = vpop.f32.mrb[0].mxu0
  %v184 = vadd.f32 %v66, %v183
  %v185 = vpop.f32.mrb[0].mxu0
  %v186 = vpop.f32.mrb[0].mxu0
  %v187 = vadd.f32 %v66, %v186
  %v188 = vpop.f32.mrb[0].mxu0
  %189 = vmatprep.mubr.bf16.mxu0 0
  %190 = vmatmul.mubr.bf16.gmra.mrb[0].mxu0 %v90
  %v191 = vpop.f32.mrb[0].mxu0
  %v192 = vadd.f32 %v66, %v191
  %v193 = vpop.f32.mrb[0].mxu0
  %v194 = vpop.f32.mrb[0].mxu0
  %v195 = vadd.f32 %v66, %v194
  %v196 = vpop.f32.mrb[0].mxu0
  %197 = vmatprep.mubr.bf16.mxu0 0
  %198 = vmatmul.mubr.bf16.gmra.mrb[0].mxu0 %v93
  %v199 = vpop.f32.mrb[0].mxu0
  %v200 = vadd.f32 %v66, %v199
  %v201 = vpop.f32.mrb[0].mxu0
  %v202 = vpop.f32.mrb[0].mxu0
  %v203 = vadd.f32 %v66, %v202
  %v204 = vpop.f32.mrb[0].mxu0
  %205 = vmatprep.mubr.bf16.mxu0 0
  %206 = vmatmul.mubr.bf16.gmra.mrb[0].mxu0 %v96
  %v207 = vpop.f32.mrb[0].mxu0
  %v208 = vadd.f32 %v66, %v207
  %v209 = vpop.f32.mrb[0].mxu0
  %v210 = vpop.f32.mrb[0].mxu0
  %v211 = vadd.f32 %v66, %v210
  %v212 = vpop.f32.mrb[0].mxu0
  %213 = vmatprep.mubr.bf16.mxu0 0
  %214 = vmatmul.mubr.bf16.gmra.mrb[0].mxu0 %v99
  %v215 = vpop.f32.mrb[0].mxu0
  %v216 = vadd.f32 %v66, %v215
  %v217 = vpop.f32.mrb[0].mxu0
  %v218 = vpop.f32.mrb[0].mxu0
  %v219 = vadd.f32 %v66, %v218
  %v220 = vpop.f32.mrb[0].mxu0
  %221 = vmatprep.mubr.bf16.mxu0 0
  %222 = vmatmul.mubr.bf16.gmra.mrb[0].mxu0 %v102
  %v223 = vpop.f32.mrb[0].mxu0
  %v224 = vadd.f32 %v66, %v223
  %v225 = vpop.f32.mrb[0].mxu0
  %v226 = vpop.f32.mrb[0].mxu0
  %v227 = vadd.f32 %v66, %v226
  %v228 = vpop.f32.mrb[0].mxu0
  %229 = vmatprep.mubr.bf16.mxu0 0
  %230 = vmatmul.mubr.bf16.gmra.mrb[0].mxu0 %v105
  %v231 = vpop.f32.mrb[0].mxu0
  %v232 = vadd.f32 %v66, %v231
  %v233 = vpop.f32.mrb[0].mxu0
  %v234 = vpop.f32.mrb[0].mxu0
  %v235 = vadd.f32 %v66, %v234
  %v236 = vpop.f32.mrb[0].mxu0
  %237 = vmatprep.mubr.bf16.mxu0 0
  %238 = vmatmul.mubr.bf16.gmra.mrb[0].mxu0 %v108
  %v239 = vpop.f32.mrb[0].mxu0
  %v240 = vadd.f32 %v66, %v239
  %v241 = vpop.f32.mrb[0].mxu0
  %v242 = vpop.f32.mrb[0].mxu0
  %v243 = vadd.f32 %v66, %v242
  %v244 = vpop.f32.mrb[0].mxu0
  %245 = vmatprep.mubr.bf16.mxu0 0
  %246 = vmatmul.mubr.bf16.gmra.mrb[0].mxu0 %v111
  %v247 = vpop.f32.mrb[0].mxu0
  %v248 = vadd.f32 %v66, %v247
  %v249 = vpop.f32.mrb[0].mxu0
  %v250 = vpop.f32.mrb[0].mxu0
  %v251 = vpop.f32.mrb[0].mxu0
  %252 = vdwg.mxu0
  %v253 = vmax.f32 %v152, 0.0
  %v254 = vmax.f32 %v155, 0.0
  %v255 = vmax.f32 %v160, 0.0
  %v256 = vmax.f32 %v163, 0.0
  %v257 = vmax.f32 %v168, 0.0
  %v258 = vmax.f32 %v171, 0.0
  %v259 = vmax.f32 %v176, 0.0
  %v260 = vmax.f32 %v179, 0.0
  %v261 = vmax.f32 %v184, 0.0
  %v262 = vmax.f32 %v187, 0.0
  %v263 = vmax.f32 %v192, 0.0
  %v264 = vmax.f32 %v195, 0.0
  %v265 = vmax.f32 %v200, 0.0
  %v266 = vmax.f32 %v203, 0.0
  %v267 = vmax.f32 %v208, 0.0
  %v268 = vmax.f32 %v211, 0.0
  %v269 = vmax.f32 %v216, 0.0
  %v270 = vmax.f32 %v219, 0.0
  %v271 = vmax.f32 %v224, 0.0
  %v272 = vmax.f32 %v227, 0.0
  %v273 = vmax.f32 %v232, 0.0
  %v274 = vmax.f32 %v235, 0.0
  %v275 = vmax.f32 %v240, 0.0
  %v276 = vmax.f32 %v243, 0.0
  %v277 = vmax.f32 %v248, 0.0
  %v278 = vpack.c.bf16 %v254, %v253
  %v279 = vpack.c.bf16 %v256, %v255
  %v280 = vpack.c.bf16 %v258, %v257
  %v281 = vpack.c.bf16 %v260, %v259
  %v282 = vpack.c.bf16 %v262, %v261
  %v283 = vpack.c.bf16 %v264, %v263
  %v284 = vpack.c.bf16 %v266, %v265
  %v285 = vpack.c.bf16 %v268, %v267
  %v286 = vpack.c.bf16 %v270, %v269
  %v287 = vpack.c.bf16 %v272, %v271
  %v288 = vpack.c.bf16 %v274, %v273
  %v289 = vpack.c.bf16 %v276, %v275
  %v290 = vpack.c.bf16 %v277, %v277
  %v291 = vld [vmem:[%s3] sm:$0xf]
  %v292 = vld [vmem:[%s3 + $0x4] sm:$0xf]
  %v293 = vld [vmem:[%s3 + $0x8] sm:$0xf]
  %v294 = vld [vmem:[%s3 + $0xc] sm:$0xf]
  %v295 = vld [vmem:[%s3 + $0x10] sm:$0xf]
  %v296 = vld [vmem:[%s3 + $0x14] sm:$0xf]
  %v297 = vld [vmem:[%s3 + $0x18] sm:$0xf]
  %v298 = vld [vmem:[%s3 + $0x1c] sm:$0xf]
  %v299 = vld [vmem:[%s3 + $0x20] sm:$0xf]
  %v300 = vld [vmem:[%s3 + $0x24] sm:$0xf]
  %v301 = vld [vmem:[%s3 + $0x28] sm:$0xf]
  %v302 = vld [vmem:[%s3 + $0x2c] sm:$0xf]
  %v303 = vld [vmem:[%s3 + $0x30] sm:$0xf]
  %v304 = vld [vmem:[%s3 + $0x34] sm:$0xf]
  %v305 = vld [vmem:[%s3 + $0x38] sm:$0xf]
  %v306 = vld [vmem:[%s3 + $0x3c] sm:$0xf]
  %v307 = vld [vmem:[%s4] sm:$0x1]
  %v309 = vlaneseq
  %v310 = vshrl.u32 %v309, 7
  %v311 = vsub.s32 0, %v310
  %v312 = vrot.slane %v307, %v311
  %v330 = vunpack.c.l.b16 %v291
  %v331 = vunpack.c.l.b16 %v292
  %v332 = vunpack.c.l.b16 %v293
  %v333 = vunpack.c.l.b16 %v294
  %v334 = vunpack.c.l.b16 %v295
  %v335 = vunpack.c.l.b16 %v296
  %v336 = vunpack.c.l.b16 %v297
  %v337 = vunpack.c.l.b16 %v298
  %v338 = vunpack.c.l.b16 %v299
  %v339 = vunpack.c.l.b16 %v300
  %v340 = vunpack.c.l.b16 %v301
  %v341 = vunpack.c.l.b16 %v302
  %v342 = vunpack.c.l.b16 %v303
  %v343 = vunpack.c.l.b16 %v304
  %v344 = vunpack.c.l.b16 %v305
  %v345 = vunpack.c.l.b16 %v306
  %v346 = vpack.c.b16 %v331, %v330
  %v347 = vpack.c.b16 %v333, %v332
  %v348 = vpack.c.b16 %v335, %v334
  %v349 = vpack.c.b16 %v337, %v336
  %v350 = vpack.c.b16 %v339, %v338
  %v351 = vpack.c.b16 %v341, %v340
  %v352 = vpack.c.b16 %v343, %v342
  %v353 = vpack.c.b16 %v345, %v344
  %362 = vmatprep.subr.bf16.mxu0 0
  %363 = vmatpush1.bf16.msra.mxu0 %v346
  %364 = vmatprep.subr.bf16.mxu0 0
  %365 = vmatpush1.bf16.msra.mxu0 %v347
  %366 = vmatprep.subr.bf16.mxu0 0
  %367 = vmatpush1.bf16.msra.mxu0 %v348
  %368 = vmatprep.subr.bf16.mxu0 0
  %369 = vmatpush1.bf16.msra.mxu0 %v349
  %370 = vmatprep.subr.bf16.mxu0 0
  %371 = vmatpush1.bf16.msra.mxu0 %v350
  %372 = vmatprep.subr.bf16.mxu0 0
  %373 = vmatpush1.bf16.msra.mxu0 %v351
  %374 = vmatprep.subr.bf16.mxu0 0
  %375 = vmatpush1.bf16.msra.mxu0 %v352
  %376 = vmatprep.subr.bf16.mxu0 0
  %377 = vmatpush1.bf16.msra.mxu0 %v353
  %378 = vmatprep.subr.bf16.mxu0 0
  %379 = vmatpush1.bf16.msra.mxu0 0
  %380 = vmatprep.subr.bf16.mxu0 0
  %381 = vmatpush1.bf16.msra.mxu0 0
  %382 = vmatprep.subr.bf16.mxu0 0
  %383 = vmatpush1.bf16.msra.mxu0 0
  %384 = vmatprep.subr.bf16.mxu0 0
  %385 = vmatpush1.bf16.msra.mxu0 0
  %386 = vmatprep.subr.bf16.mxu0 0
  %387 = vmatpush1.bf16.msra.mxu0 0
  %388 = vmatprep.subr.bf16.mxu0 0
  %389 = vmatpush1.bf16.msra.mxu0 0
  %390 = vmatprep.subr.bf16.mxu0 0
  %391 = vmatpush1.bf16.msra.mxu0 0
  %392 = vmatprep.subr.bf16.mxu0 0
  %393 = vmatpush1.bf16.msra.mxu0 0
  %394 = vmatprep.mubr.bf16.mxu0 0
  %395 = vmatmul.mubr.bf16.gmra.mrb[0].mxu0 %v278
  %v396 = vpop.f32.mrb[0].mxu0
  %v397 = vadd.f32 %v312, %v396
  %v398 = vpop.f32.mrb[0].mxu0
  %v399 = vpop.f32.mrb[0].mxu0
  %v400 = vadd.f32 %v312, %v399
  %v401 = vpop.f32.mrb[0].mxu0
  %402 = vmatprep.mubr.bf16.mxu0 0
  %403 = vmatmul.mubr.bf16.gmra.mrb[0].mxu0 %v279
  %v404 = vpop.f32.mrb[0].mxu0
  %v405 = vadd.f32 %v312, %v404
  %v406 = vpop.f32.mrb[0].mxu0
  %v407 = vpop.f32.mrb[0].mxu0
  %v408 = vadd.f32 %v312, %v407
  %v409 = vpop.f32.mrb[0].mxu0
  %410 = vmatprep.mubr.bf16.mxu0 0
  %411 = vmatmul.mubr.bf16.gmra.mrb[0].mxu0 %v280
  %v412 = vpop.f32.mrb[0].mxu0
  %v413 = vadd.f32 %v312, %v412
  %v414 = vpop.f32.mrb[0].mxu0
  %v415 = vpop.f32.mrb[0].mxu0
  %v416 = vadd.f32 %v312, %v415
  %v417 = vpop.f32.mrb[0].mxu0
  %418 = vmatprep.mubr.bf16.mxu0 0
  %419 = vmatmul.mubr.bf16.gmra.mrb[0].mxu0 %v281
  %v420 = vpop.f32.mrb[0].mxu0
  %v421 = vadd.f32 %v312, %v420
  %v422 = vpop.f32.mrb[0].mxu0
  %v423 = vpop.f32.mrb[0].mxu0
  %v424 = vadd.f32 %v312, %v423
  %v425 = vpop.f32.mrb[0].mxu0
  %426 = vmatprep.mubr.bf16.mxu0 0
  %427 = vmatmul.mubr.bf16.gmra.mrb[0].mxu0 %v282
  %v428 = vpop.f32.mrb[0].mxu0
  %v429 = vadd.f32 %v312, %v428
  %v430 = vpop.f32.mrb[0].mxu0
  %v431 = vpop.f32.mrb[0].mxu0
  %v432 = vadd.f32 %v312, %v431
  %v433 = vpop.f32.mrb[0].mxu0
  %434 = vmatprep.mubr.bf16.mxu0 0
  %435 = vmatmul.mubr.bf16.gmra.mrb[0].mxu0 %v283
  %v436 = vpop.f32.mrb[0].mxu0
  %v437 = vadd.f32 %v312, %v436
  %v438 = vpop.f32.mrb[0].mxu0
  %v439 = vpop.f32.mrb[0].mxu0
  %v440 = vadd.f32 %v312, %v439
  %v441 = vpop.f32.mrb[0].mxu0
  %442 = vmatprep.mubr.bf16.mxu0 0
  %443 = vmatmul.mubr.bf16.gmra.mrb[0].mxu0 %v284
  %v444 = vpop.f32.mrb[0].mxu0
  %v445 = vadd.f32 %v312, %v444
  %v446 = vpop.f32.mrb[0].mxu0
  %v447 = vpop.f32.mrb[0].mxu0
  %v448 = vadd.f32 %v312, %v447
  %v449 = vpop.f32.mrb[0].mxu0
  %450 = vmatprep.mubr.bf16.mxu0 0
  %451 = vmatmul.mubr.bf16.gmra.mrb[0].mxu0 %v285
  %v452 = vpop.f32.mrb[0].mxu0
  %v453 = vadd.f32 %v312, %v452
  %v454 = vpop.f32.mrb[0].mxu0
  %v455 = vpop.f32.mrb[0].mxu0
  %v456 = vadd.f32 %v312, %v455
  %v457 = vpop.f32.mrb[0].mxu0
  %458 = vmatprep.mubr.bf16.mxu0 0
  %459 = vmatmul.mubr.bf16.gmra.mrb[0].mxu0 %v286
  %v460 = vpop.f32.mrb[0].mxu0
  %v461 = vadd.f32 %v312, %v460
  %v462 = vpop.f32.mrb[0].mxu0
  %v463 = vpop.f32.mrb[0].mxu0
  %v464 = vadd.f32 %v312, %v463
  %v465 = vpop.f32.mrb[0].mxu0
  %466 = vmatprep.mubr.bf16.mxu0 0
  %467 = vmatmul.mubr.bf16.gmra.mrb[0].mxu0 %v287
  %v468 = vpop.f32.mrb[0].mxu0
  %v469 = vadd.f32 %v312, %v468
  %v470 = vpop.f32.mrb[0].mxu0
  %v471 = vpop.f32.mrb[0].mxu0
  %v472 = vadd.f32 %v312, %v471
  %v473 = vpop.f32.mrb[0].mxu0
  %474 = vmatprep.mubr.bf16.mxu0 0
  %475 = vmatmul.mubr.bf16.gmra.mrb[0].mxu0 %v288
  %v476 = vpop.f32.mrb[0].mxu0
  %v477 = vadd.f32 %v312, %v476
  %v478 = vpop.f32.mrb[0].mxu0
  %v479 = vpop.f32.mrb[0].mxu0
  %v480 = vadd.f32 %v312, %v479
  %v481 = vpop.f32.mrb[0].mxu0
  %482 = vmatprep.mubr.bf16.mxu0 0
  %483 = vmatmul.mubr.bf16.gmra.mrb[0].mxu0 %v289
  %v484 = vpop.f32.mrb[0].mxu0
  %v485 = vadd.f32 %v312, %v484
  %v486 = vpop.f32.mrb[0].mxu0
  %v487 = vpop.f32.mrb[0].mxu0
  %v488 = vadd.f32 %v312, %v487
  %v489 = vpop.f32.mrb[0].mxu0
  %490 = vmatprep.mubr.bf16.mxu0 0
  %491 = vmatmul.mubr.bf16.gmra.mrb[0].mxu0 %v290
  %v492 = vpop.f32.mrb[0].mxu0
  %v493 = vadd.f32 %v312, %v492
  %v494 = vpop.f32.mrb[0].mxu0
  %v495 = vpop.f32.mrb[0].mxu0
  %v496 = vpop.f32.mrb[0].mxu0
  %497 = vdwg.mxu0
  %vm498 = vcmask 64512
  %499 = vst.msk [vmem:[%s5] sm:$0xff] %vm498, %v397
  %500 = vst.msk [vmem:[%s5 + $0x8] sm:$0xff] %vm498, %v400
  %501 = vst.msk [vmem:[%s5 + $0x10] sm:$0xff] %vm498, %v405
  %502 = vst.msk [vmem:[%s5 + $0x18] sm:$0xff] %vm498, %v408
  %503 = vst.msk [vmem:[%s5 + $0x20] sm:$0xff] %vm498, %v413
  %504 = vst.msk [vmem:[%s5 + $0x28] sm:$0xff] %vm498, %v416
  %505 = vst.msk [vmem:[%s5 + $0x30] sm:$0xff] %vm498, %v421
  %506 = vst.msk [vmem:[%s5 + $0x38] sm:$0xff] %vm498, %v424
  %507 = vst.msk [vmem:[%s5 + $0x40] sm:$0xff] %vm498, %v429
  %508 = vst.msk [vmem:[%s5 + $0x48] sm:$0xff] %vm498, %v432
  %509 = vst.msk [vmem:[%s5 + $0x50] sm:$0xff] %vm498, %v437
  %510 = vst.msk [vmem:[%s5 + $0x58] sm:$0xff] %vm498, %v440
  %511 = vst.msk [vmem:[%s5 + $0x60] sm:$0xff] %vm498, %v445
  %512 = vst.msk [vmem:[%s5 + $0x68] sm:$0xff] %vm498, %v448
  %513 = vst.msk [vmem:[%s5 + $0x70] sm:$0xff] %vm498, %v453
  %514 = vst.msk [vmem:[%s5 + $0x78] sm:$0xff] %vm498, %v456
  %515 = vst.msk [vmem:[%s5 + $0x80] sm:$0xff] %vm498, %v461
  %516 = vst.msk [vmem:[%s5 + $0x88] sm:$0xff] %vm498, %v464
  %517 = vst.msk [vmem:[%s5 + $0x90] sm:$0xff] %vm498, %v469
  %518 = vst.msk [vmem:[%s5 + $0x98] sm:$0xff] %vm498, %v472
  %519 = vst.msk [vmem:[%s5 + $0xa0] sm:$0xff] %vm498, %v477
  %520 = vst.msk [vmem:[%s5 + $0xa8] sm:$0xff] %vm498, %v480
  %521 = vst.msk [vmem:[%s5 + $0xb0] sm:$0xff] %vm498, %v485
  %522 = vst.msk [vmem:[%s5 + $0xb8] sm:$0xff] %vm498, %v488
  %523 = vst.msk [vmem:[%s5 + $0xc0] sm:$0xff] %vm498, %v493
  // Predicated region
  $region22: #{neural_network_forward.1} parent=0 // pred_check
    _
  $region23: #{neural_network_forward.1} parent=0 // pred_check_branch
    %525 = sbr.rel (0) target = $region25
  $region24: #{neural_network_forward.1} parent=0 // pred_region
    _
  $region25: #{neural_network_forward.1} parent=0 // pred_fallthru
    _
  // Predicated region
  $region26: #{neural_network_forward.1} parent=0 // pred_check
    _
  $region27: #{neural_network_forward.1} parent=0 // pred_check_branch
    %527 = sbr.rel (0) target = $region29
  $region28: #{neural_network_forward.1} parent=0 // pred_region
    _
  $region29: #{neural_network_forward.1} parent=0 // pred_fallthru
    _

</llo_original>
